<compile_context>
chip_gen: v7x
topology: tpu7x:2x2x1
jax: 0.10.0
libtpu: 0.0.40
codegen_flags: <defaults>
</compile_context>

<pallas_src>
import jax
import jax.numpy as jnp
import numpy as np
from jax.experimental import pallas as pl
from jax.experimental.pallas import tpu as pltpu


def basic_block_kernel(x_ref, t1_ref, b1_ref, t2_ref, b2_ref, out_ref):
    # x_ref : (1, H, W*C)  f32, lane-dense activation row-major layout
    # t1/t2 : (3*W*C, W*C) bf16, block-Toeplitz conv weights (BN scale folded)
    # b1/b2 : (1, W*C)     f32, per-channel BN bias tiled across W
    # out   : (1, H, W*C)  f32
    x32 = x_ref[0]                              # (H, WC) f32 (kept for residual)
    x = x32.astype(jnp.bfloat16)                # MXU input
    H = x.shape[0]

    def prev_row(a):                            # a[h-1], top row zero (H padding)
        return jnp.concatenate([jnp.zeros_like(a[:1]), a[:H - 1]], axis=0)

    def next_row(a):                            # a[h+1], bottom row zero
        return jnp.concatenate([a[1:], jnp.zeros_like(a[:1])], axis=0)

    def conv3x3(a, t_ref):
        # W-border zero padding is baked into the block-Toeplitz weight, so the
        # whole 3x3 conv is a single lane-dense matmul with K = 3*W*C.
        patches = jnp.concatenate([prev_row(a), a, next_row(a)], axis=1)  # (H, 3*WC)
        return jnp.dot(patches, t_ref[...],
                       preferred_element_type=jnp.float32)                # (H, WC) f32

    # conv1 + bn1 (folded) + relu
    y1 = jnp.maximum(conv3x3(x, t1_ref) + b1_ref[...], 0.0)               # f32
    # conv2 + bn2 (folded)
    y2 = conv3x3(y1.astype(jnp.bfloat16), t2_ref) + b2_ref[...]           # f32
    # residual add (exact f32 identity) + relu, lane-dense store
    out_ref[0] = jnp.maximum(y2 + x32, 0.0)


def fold_bn(gamma, beta, mean, var, eps=1e-5):
    scale = gamma / jnp.sqrt(var + eps)
    bias = beta - mean * scale
    return scale, bias


def _toeplitz_weight(w_oihw, bn, W):
    """torch OIHW (Cout,Cin,3,3) + eval BN -> ((3*W*Cin, W*Cout) bf16, (1, W*Cout) f32)."""
    Cout, Cin, _, _ = w_oihw.shape
    scale, bias = fold_bn(**bn)
    w_hwio = jnp.transpose(w_oihw, (2, 3, 1, 0)).astype(jnp.float32) * scale  # (3,3,Cin,Cout)

    # indicator[wp, dx, w] = 1 iff wp == w + (dx-1) and both in [0, W)
    # (absent taps == zero padding at the W borders).
    ind = np.zeros((W, 3, W), np.float32)
    for w in range(W):
        for dx in range(3):
            wp = w + dx - 1
            if 0 <= wp < W:
                ind[wp, dx, w] = 1.0

    # T[dy, wp, ci, w, co] = sum_dx ind[wp,dx,w] * w_hwio[dy,dx,ci,co]
    t = jnp.einsum("pdw,ydio->ypiwo", jnp.asarray(ind), w_hwio)
    t = t.reshape(3 * W * Cin, W * Cout).astype(jnp.bfloat16)
    b = jnp.tile(bias, (W,)).reshape(1, W * Cout).astype(jnp.float32)
    return t, b


def basic_block_forward(x_nchw, w1, bn1, w2, bn2):
    """BasicBlock forward (stride=1, downsample=None), inference-mode BN."""
    N, Cin, H, W = x_nchw.shape
    Cout = w1.shape[0]
    assert Cin == Cout, "downsample=None requires inplanes == planes"
    WC = W * Cout

    # Single lane-dense activation stream (read from HBM once).
    x_lane = jnp.transpose(x_nchw, (0, 2, 3, 1)).reshape(N, H, W * Cin)
    x_lane = x_lane.astype(jnp.float32)

    t1, b1 = _toeplitz_weight(w1, bn1, W)
    t2, b2 = _toeplitz_weight(w2, bn2, W)

    flops = 2 * N * (2 * H * (3 * WC) * WC)      # two Toeplitz matmuls per image
    bytes_accessed = (x_lane.size * 4 + N * H * WC * 4
                      + t1.size * 2 + t2.size * 2 + (b1.size + b2.size) * 4)
    cost = pl.CostEstimate(flops=flops, transcendentals=0,
                           bytes_accessed=bytes_accessed)

    out2d = pl.pallas_call(
        basic_block_kernel,
        out_shape=jax.ShapeDtypeStruct((N, H, WC), jnp.float32),
        grid_spec=pltpu.PrefetchScalarGridSpec(
            num_scalar_prefetch=0,
            grid=(N,),
            in_specs=[
                pl.BlockSpec((1, H, W * Cin), lambda n: (n, 0, 0)),
                pl.BlockSpec((3 * W * Cin, WC), lambda n: (0, 0)),
                pl.BlockSpec((1, WC), lambda n: (0, 0)),
                pl.BlockSpec((3 * WC, WC), lambda n: (0, 0)),
                pl.BlockSpec((1, WC), lambda n: (0, 0)),
            ],
            out_specs=pl.BlockSpec((1, H, WC), lambda n: (n, 0, 0)),
        ),
        compiler_params=pltpu.CompilerParams(
            dimension_semantics=("parallel",),   # megacore split on v7x
            vmem_limit_bytes=32 * 1024 * 1024,
        ),
        cost_estimate=cost,
    )(x_lane, t1, b1, t2, b2)

    out_nhwc = out2d.reshape(N, H, W, Cout)
    return jnp.transpose(out_nhwc, (0, 3, 1, 2))


def reference_forward(x, w1, bn1, w2, bn2):
    """Plain-JAX reference (NCHW, matches PyTorch eval-mode semantics)."""
    def conv(x, w):
        return jax.lax.conv_general_dilated(
            x, w, window_strides=(1, 1), padding=((1, 1), (1, 1)),
            dimension_numbers=("NCHW", "OIHW", "NCHW"))

    def bn(x, p):
        s, b = fold_bn(**p)
        return x * s[None, :, None, None] + b[None, :, None, None]

    out = jnp.maximum(bn(conv(x, w1), bn1), 0.0)
    out = bn(conv(out, w2), bn2)
    return jnp.maximum(out + x, 0.0)


if __name__ == "__main__":
    key = jax.random.PRNGKey(0)
    k = jax.random.split(key, 12)

    N, C, H, W = 2, 8, 16, 16       # inplanes = planes = 8, stride = 1 (W*C = 128)
    planes = C

    x = jax.random.normal(k[0], (N, C, H, W), jnp.float32)
    w1 = 0.1 * jax.random.normal(k[1], (planes, C, 3, 3), jnp.float32)
    w2 = 0.1 * jax.random.normal(k[2], (planes, planes, 3, 3), jnp.float32)

    bn1 = dict(
        gamma=1.0 + 0.1 * jax.random.normal(k[3], (planes,), jnp.float32),
        beta=0.1 * jax.random.normal(k[4], (planes,), jnp.float32),
        mean=0.1 * jax.random.normal(k[5], (planes,), jnp.float32),
        var=1.0 + 0.1 * jax.random.uniform(k[6], (planes,), jnp.float32),
    )
    bn2 = dict(
        gamma=1.0 + 0.1 * jax.random.normal(k[7], (planes,), jnp.float32),
        beta=0.1 * jax.random.normal(k[8], (planes,), jnp.float32),
        mean=0.1 * jax.random.normal(k[9], (planes,), jnp.float32),
        var=1.0 + 0.1 * jax.random.uniform(k[10], (planes,), jnp.float32),
    )

    out = jax.block_until_ready(basic_block_forward(x, w1, bn1, w2, bn2))
    ref = jax.block_until_ready(reference_forward(x, w1, bn1, w2, bn2))

    assert out.shape == (N, planes, H, W)
    np.testing.assert_allclose(np.asarray(out), np.asarray(ref),
                               atol=5e-2, rtol=5e-2)
    print("KERNEL_OK")
</pallas_src>

<mosaic_0001>
module attributes {stable_mosaic.version = 11 : i64} {
  func.func @basic_block_kernel(%arg0: i32, %arg1: memref<1x16x128xf32, #tpu.memory_space<vmem>>, %arg2: memref<384x128xbf16, #tpu.memory_space<vmem>>, %arg3: memref<1x128xf32, #tpu.memory_space<vmem>>, %arg4: memref<384x128xbf16, #tpu.memory_space<vmem>>, %arg5: memref<1x128xf32, #tpu.memory_space<vmem>>, %arg6: memref<1x16x128xf32, #tpu.memory_space<vmem>>) attributes {dimension_semantics = [#tpu.dimension_semantics<parallel>], iteration_bounds = array<i64: 2>, scalar_prefetch = 0 : i64, scratch_operands = 0 : i64, tpu.core_type = #tpu.core_type<tc>, window_params = [{transform_indices = @transform_0, window_bounds = array<i64: 1, 16, 128>}, {pipeline_mode = #tpu.pipeline_mode<synchronous>, transform_indices = @transform_1, window_bounds = array<i64: 384, 128>}, {pipeline_mode = #tpu.pipeline_mode<synchronous>, transform_indices = @transform_2, window_bounds = array<i64: 1, 128>}, {pipeline_mode = #tpu.pipeline_mode<synchronous>, transform_indices = @transform_3, window_bounds = array<i64: 384, 128>}, {pipeline_mode = #tpu.pipeline_mode<synchronous>, transform_indices = @transform_4, window_bounds = array<i64: 1, 128>}, {transform_indices = @transform_5, window_bounds = array<i64: 1, 16, 128>}]} {
    %c0 = arith.constant 0 : index
    %c0_0 = arith.constant 0 : index
    %c0_1 = arith.constant 0 : index
    %0 = vector.load %arg1[%c0, %c0_0, %c0_1] : memref<1x16x128xf32, #tpu.memory_space<vmem>>, vector<1x16x128xf32>
    %1 = vector.shape_cast %0 : vector<1x16x128xf32> to vector<16x128xf32>
    %2 = arith.truncf %1 : vector<16x128xf32> to vector<16x128xbf16>
    %cst = arith.constant 0.000000e+00 : bf16
    %3 = vector.broadcast %cst : bf16 to vector<1x128xbf16>
    %4 = vector.extract_strided_slice %2 {offsets = [0, 0], sizes = [15, 128], strides = [1, 1]} : vector<16x128xbf16> to vector<15x128xbf16>
    %5 = tpu.concatenate %3, %4 in 0 : vector<1x128xbf16>, vector<15x128xbf16> -> vector<16x128xbf16>
    %6 = vector.extract_strided_slice %2 {offsets = [1, 0], sizes = [15, 128], strides = [1, 1]} : vector<16x128xbf16> to vector<15x128xbf16>
    %cst_2 = arith.constant 0.000000e+00 : bf16
    %7 = vector.broadcast %cst_2 : bf16 to vector<1x128xbf16>
    %8 = tpu.concatenate %6, %7 in 0 : vector<15x128xbf16>, vector<1x128xbf16> -> vector<16x128xbf16>
    %9 = tpu.concatenate %5, %2, %8 in 1 : vector<16x128xbf16>, vector<16x128xbf16>, vector<16x128xbf16> -> vector<16x384xbf16>
    %c0_3 = arith.constant 0 : index
    %c0_4 = arith.constant 0 : index
    %10 = vector.load %arg2[%c0_3, %c0_4] : memref<384x128xbf16, #tpu.memory_space<vmem>>, vector<384x128xbf16>
    %cst_5 = arith.constant dense<0.000000e+00> : vector<16x128xf32>
    %11 = tpu.matmul %9, %10, %cst_5 {dimension_numbers = #tpu.dot_dimension_numbers<[1], [0], [0], [1], [0, 0, 1, 1], [], []>} : vector<16x384xbf16>, vector<384x128xbf16>, vector<16x128xf32> -> vector<16x128xf32>
    %c0_6 = arith.constant 0 : index
    %c0_7 = arith.constant 0 : index
    %12 = vector.load %arg3[%c0_6, %c0_7] : memref<1x128xf32, #tpu.memory_space<vmem>>, vector<1x128xf32>
    %13 = vector.broadcast %12 : vector<1x128xf32> to vector<16x128xf32>
    %14 = arith.addf %11, %13 : vector<16x128xf32>
    %cst_8 = arith.constant 0.000000e+00 : f32
    %15 = vector.broadcast %cst_8 : f32 to vector<16x128xf32>
    %16 = arith.maximumf %14, %15 : vector<16x128xf32>
    %17 = arith.truncf %16 : vector<16x128xf32> to vector<16x128xbf16>
    %cst_9 = arith.constant 0.000000e+00 : bf16
    %18 = vector.broadcast %cst_9 : bf16 to vector<1x128xbf16>
    %19 = vector.extract_strided_slice %17 {offsets = [0, 0], sizes = [15, 128], strides = [1, 1]} : vector<16x128xbf16> to vector<15x128xbf16>
    %20 = tpu.concatenate %18, %19 in 0 : vector<1x128xbf16>, vector<15x128xbf16> -> vector<16x128xbf16>
    %21 = vector.extract_strided_slice %17 {offsets = [1, 0], sizes = [15, 128], strides = [1, 1]} : vector<16x128xbf16> to vector<15x128xbf16>
    %cst_10 = arith.constant 0.000000e+00 : bf16
    %22 = vector.broadcast %cst_10 : bf16 to vector<1x128xbf16>
    %23 = tpu.concatenate %21, %22 in 0 : vector<15x128xbf16>, vector<1x128xbf16> -> vector<16x128xbf16>
    %24 = tpu.concatenate %20, %17, %23 in 1 : vector<16x128xbf16>, vector<16x128xbf16>, vector<16x128xbf16> -> vector<16x384xbf16>
    %c0_11 = arith.constant 0 : index
    %c0_12 = arith.constant 0 : index
    %25 = vector.load %arg4[%c0_11, %c0_12] : memref<384x128xbf16, #tpu.memory_space<vmem>>, vector<384x128xbf16>
    %cst_13 = arith.constant dense<0.000000e+00> : vector<16x128xf32>
    %26 = tpu.matmul %24, %25, %cst_13 {dimension_numbers = #tpu.dot_dimension_numbers<[1], [0], [0], [1], [0, 0, 1, 1], [], []>} : vector<16x384xbf16>, vector<384x128xbf16>, vector<16x128xf32> -> vector<16x128xf32>
    %c0_14 = arith.constant 0 : index
    %c0_15 = arith.constant 0 : index
    %27 = vector.load %arg5[%c0_14, %c0_15] : memref<1x128xf32, #tpu.memory_space<vmem>>, vector<1x128xf32>
    %28 = vector.broadcast %27 : vector<1x128xf32> to vector<16x128xf32>
    %29 = arith.addf %26, %28 : vector<16x128xf32>
    %30 = arith.addf %29, %1 : vector<16x128xf32>
    %cst_16 = arith.constant 0.000000e+00 : f32
    %31 = vector.broadcast %cst_16 : f32 to vector<16x128xf32>
    %32 = arith.maximumf %30, %31 : vector<16x128xf32>
    %c0_17 = arith.constant 0 : index
    %c0_18 = arith.constant 0 : index
    %c0_19 = arith.constant 0 : index
    %33 = vector.load %arg6[%c0_17, %c0_18, %c0_19] : memref<1x16x128xf32, #tpu.memory_space<vmem>>, vector<1x16x128xf32>
    %34 = vector.shape_cast %33 : vector<1x16x128xf32> to vector<16x128xf32>
    %35 = vector.shape_cast %32 : vector<16x128xf32> to vector<1x16x128xf32>
    tpu.vector_store %arg6[%c0_17, %c0_18, %c0_19], %35 {strides = array<i32>} : memref<1x16x128xf32, #tpu.memory_space<vmem>>, vector<1x16x128xf32>,
    return
  }
  func.func @transform_0(%arg0: i32) -> (i32, i32, i32) {
    %c0_i32 = arith.constant 0 : i32
    %c0_i32_0 = arith.constant 0 : i32
    %c0_i32_1 = arith.constant 0 : i32
    return %arg0, %c0_i32, %c0_i32_0 : i32, i32, i32
  }
  func.func @transform_1(%arg0: i32) -> (i32, i32) {
    %c0_i32 = arith.constant 0 : i32
    %c0_i32_0 = arith.constant 0 : i32
    %c0_i32_1 = arith.constant 0 : i32
    return %c0_i32, %c0_i32_0 : i32, i32
  }
  func.func @transform_2(%arg0: i32) -> (i32, i32) {
    %c0_i32 = arith.constant 0 : i32
    %c0_i32_0 = arith.constant 0 : i32
    %c0_i32_1 = arith.constant 0 : i32
    return %c0_i32, %c0_i32_0 : i32, i32
  }
  func.func @transform_3(%arg0: i32) -> (i32, i32) {
    %c0_i32 = arith.constant 0 : i32
    %c0_i32_0 = arith.constant 0 : i32
    %c0_i32_1 = arith.constant 0 : i32
    return %c0_i32, %c0_i32_0 : i32, i32
  }
  func.func @transform_4(%arg0: i32) -> (i32, i32) {
    %c0_i32 = arith.constant 0 : i32
    %c0_i32_0 = arith.constant 0 : i32
    %c0_i32_1 = arith.constant 0 : i32
    return %c0_i32, %c0_i32_0 : i32, i32
  }
  func.func @transform_5(%arg0: i32) -> (i32, i32, i32) {
    %c0_i32 = arith.constant 0 : i32
    %c0_i32_0 = arith.constant 0 : i32
    %c0_i32_1 = arith.constant 0 : i32
    return %arg0, %c0_i32, %c0_i32_0 : i32, i32, i32
  }
}

</mosaic_0001>

<llo_original>
// kernel: tpu_custom_call.1
$region0: #{tpu_custom_call.1}
  #allocation0 [shape = 'u32[]', space=smem, size = 0x4, offset = 0x4, fixed_abs, tag = 'smem constant byte address 0x4 - core index']
  #allocation1 [shape = 'u32[144,128]{1,0:T(1,128)}', space=vmem, size = 0x12000, scoped, tag = 'internal scratch']
  %s0 = inlined_call_operand.hbm [shape: f32[2,16,128], index: 0, kind: input, shape index: {}]
  %s1 = inlined_call_operand.hbm [shape: bf16[384,128], index: 1, kind: input, shape index: {}]
  %s2 = inlined_call_operand.vmem [shape: f32[1,128], index: 2, kind: input, shape index: {}]
  %s3 = inlined_call_operand.hbm [shape: bf16[384,128], index: 3, kind: input, shape index: {}]
  %s4 = inlined_call_operand.vmem [shape: f32[1,128], index: 4, kind: input, shape index: {}]
  %s5 = inlined_call_operand.hbm [shape: f32[2,16,128], index: 5, kind: output, shape index: {}]
  %s6 = sld [smem:[#allocation0]]
  $region65: #{tpu_custom_call.1} parent=0
    _
  %s8 = ssub.s32 1, %s6
  %s9 = scalar_select 0, %s8, %s6
  $region1: #{tpu_custom_call.1} parent=0
    #allocation2 [shape = 'u8[16384]{0}', space=vmem, size = 0x4000, scoped, tag = 'input window, operand 0']
    #allocation3 [shape = 's32[2]{0}', space=sflag, size = 0x8, scoped, tag = 'scoped memory for tpu_custom_call.1']
    #allocation4 [shape = 's32[2]{0}', space=sflag, size = 0x8, scoped, tag = 'scoped memory for tpu_custom_call.1']
    #allocation5 [shape = 'u8[98304]{0}', space=vmem, size = 0x18000, scoped, tag = 'input window, operand 1, single buffered']
    #allocation6 [shape = 's32[1]{0}', space=sflag, size = 0x4, scoped, tag = 'scoped memory for tpu_custom_call.1']
    #allocation7 [shape = 'u8[98304]{0}', space=vmem, size = 0x18000, scoped, tag = 'input window, operand 3, single buffered']
    #allocation8 [shape = 'u8[16384]{0}', space=vmem, size = 0x4000, scoped, tag = 'output window, operand 0']
    %10 = vsyncpa [#allocation3], 0
    %s11 = scalar_lea.sflag [#allocation3], 1
    %12 = vsyncpa %s11, 0
    %13 = vsyncpa [#allocation6], 0
    %14 = vsyncpa [#allocation4], 0
    %s15 = scalar_lea.sflag [#allocation4], 1
    %16 = vsyncpa %s15, 0
    loop: start=0, step=1, limit=4
    $region2: #{tpu_custom_call.1} parent=1 // loop_pre_header
      _
    $region3: #{tpu_custom_call.1} parent=1 // loop_header
      %s18 = sphi 0, %s22
      %p19 = scmp.ge.s32.totalorder %s18, 4
      %s28 = sphi 0, %s30
      %s31 = sphi 0, %s28
      %s32 = sphi 0, %s31
      %s48 = sphi 0, %s32
      %s52 = sphi 0, %s52
      %s54 = sphi 0, %s52
      %s55 = sphi 0, %s54
      %s69 = sphi 0, %s55
      %s73 = sphi 0, %s73
      %s75 = sphi 0, %s73
      %s76 = sphi 0, %s75
      %s90 = sphi 0, %s76
      %s94 = sphi 0, %s94
      %s96 = sphi 0, %s94
      %s97 = sphi 0, %s96
      %s111 = sphi 0, %s97
      %s115 = sphi 0, %s115
      %s117 = sphi 0, %s115
      %s118 = sphi 0, %s117
      %s132 = sphi 0, %s118
      %s138 = sphi 0, %s140
      %s141 = sphi 0, %s138
      %s142 = sphi 0, %s141
      %s158 = sphi 0, %s142
    $region4: #{tpu_custom_call.1} parent=1 // loop_header_branch
      %21 = sbr.rel (%p19) target = $region8
    $region5: #{tpu_custom_call.1} parent=1 // loop_body
      %s23 = ssub.s32 %s18, 1
      %s24 = ssub.s32 %s18, 2
      %s25 = sadd.s32 %s18, 1
      %s26 = ssub.s32 %s18, %s25
      %p27 = scmp.eq.s32.totalorder %s26, 0
      %s29 = sadd.s32 %s28, 1
      %s30 = scalar_select %p27, %s28, %s29
      %p33 = pneg %p27
      %p34 = scmp.eq.s32.totalorder %s18, 1
      %p35 = por %p33, %p34
      %p36 = scmp.ne.s32.totalorder %s28, %s31
      %p37 = scmp.eq.s32.totalorder %s18, 0
      %p38 = por %p36, %p37
      %p39 = scmp.ne.s32.totalorder %s28, %s31
      %p40 = scmp.eq.s32.totalorder %s23, 1
      %p41 = por %p39, %p40
      %p42 = scmp.ne.s32.totalorder %s31, %s32
      %p43 = scmp.eq.s32.totalorder %s23, 0
      %p44 = por %p42, %p43
      %p45 = scmp.ne.s32.totalorder %s31, %s32
      %p46 = scmp.eq.s32.totalorder %s24, 1
      %p47 = por %p45, %p46
      %p49 = scmp.ne.s32.totalorder %s32, %s48
      %p50 = scmp.eq.s32.totalorder %s24, 0
      %p51 = por %p49, %p50
      %s53 = sadd.s32 %s52, 1
      %p56 = scmp.eq.s32.totalorder %s18, 1
      %p57 = scmp.ne.s32.totalorder %s52, %s54
      %p58 = scmp.eq.s32.totalorder %s18, 0
      %p59 = por %p57, %p58
      %p60 = scmp.ne.s32.totalorder %s52, %s54
      %p61 = scmp.eq.s32.totalorder %s23, 1
      %p62 = por %p60, %p61
      %p63 = scmp.ne.s32.totalorder %s54, %s55
      %p64 = scmp.eq.s32.totalorder %s23, 0
      %p65 = por %p63, %p64
      %p66 = scmp.ne.s32.totalorder %s54, %s55
      %p67 = scmp.eq.s32.totalorder %s24, 1
      %p68 = por %p66, %p67
      %p70 = scmp.ne.s32.totalorder %s55, %s69
      %p71 = scmp.eq.s32.totalorder %s24, 0
      %p72 = por %p70, %p71
      %s74 = sadd.s32 %s73, 1
      %p77 = scmp.eq.s32.totalorder %s18, 1
      %p78 = scmp.ne.s32.totalorder %s73, %s75
      %p79 = scmp.eq.s32.totalorder %s18, 0
      %p80 = por %p78, %p79
      %p81 = scmp.ne.s32.totalorder %s73, %s75
      %p82 = scmp.eq.s32.totalorder %s23, 1
      %p83 = por %p81, %p82
      %p84 = scmp.ne.s32.totalorder %s75, %s76
      %p85 = scmp.eq.s32.totalorder %s23, 0
      %p86 = por %p84, %p85
      %p87 = scmp.ne.s32.totalorder %s75, %s76
      %p88 = scmp.eq.s32.totalorder %s24, 1
      %p89 = por %p87, %p88
      %p91 = scmp.ne.s32.totalorder %s76, %s90
      %p92 = scmp.eq.s32.totalorder %s24, 0
      %p93 = por %p91, %p92
      %s95 = sadd.s32 %s94, 1
      %p98 = scmp.eq.s32.totalorder %s18, 1
      %p99 = scmp.ne.s32.totalorder %s94, %s96
      %p100 = scmp.eq.s32.totalorder %s18, 0
      %p101 = por %p99, %p100
      %p102 = scmp.ne.s32.totalorder %s94, %s96
      %p103 = scmp.eq.s32.totalorder %s23, 1
      %p104 = por %p102, %p103
      %p105 = scmp.ne.s32.totalorder %s96, %s97
      %p106 = scmp.eq.s32.totalorder %s23, 0
      %p107 = por %p105, %p106
      %p108 = scmp.ne.s32.totalorder %s96, %s97
      %p109 = scmp.eq.s32.totalorder %s24, 1
      %p110 = por %p108, %p109
      %p112 = scmp.ne.s32.totalorder %s97, %s111
      %p113 = scmp.eq.s32.totalorder %s24, 0
      %p114 = por %p112, %p113
      %s116 = sadd.s32 %s115, 1
      %p119 = scmp.eq.s32.totalorder %s18, 1
      %p120 = scmp.ne.s32.totalorder %s115, %s117
      %p121 = scmp.eq.s32.totalorder %s18, 0
      %p122 = por %p120, %p121
      %p123 = scmp.ne.s32.totalorder %s115, %s117
      %p124 = scmp.eq.s32.totalorder %s23, 1
      %p125 = por %p123, %p124
      %p126 = scmp.ne.s32.totalorder %s117, %s118
      %p127 = scmp.eq.s32.totalorder %s23, 0
      %p128 = por %p126, %p127
      %p129 = scmp.ne.s32.totalorder %s117, %s118
      %p130 = scmp.eq.s32.totalorder %s24, 1
      %p131 = por %p129, %p130
      %p133 = scmp.ne.s32.totalorder %s118, %s132
      %p134 = scmp.eq.s32.totalorder %s24, 0
      %p135 = por %p133, %p134
      %s136 = ssub.s32 %s18, %s25
      %p137 = scmp.eq.s32.totalorder %s136, 0
      %s139 = sadd.s32 %s138, 1
      %s140 = scalar_select %p137, %s138, %s139
      %p143 = pneg %p137
      %p144 = scmp.eq.s32.totalorder %s18, 1
      %p145 = por %p143, %p144
      %p146 = scmp.ne.s32.totalorder %s138, %s141
      %p147 = scmp.eq.s32.totalorder %s18, 0
      %p148 = por %p146, %p147
      %p149 = scmp.ne.s32.totalorder %s138, %s141
      %p150 = scmp.eq.s32.totalorder %s23, 1
      %p151 = por %p149, %p150
      %p152 = scmp.ne.s32.totalorder %s141, %s142
      %p153 = scmp.eq.s32.totalorder %s23, 0
      %p154 = por %p152, %p153
      %p155 = scmp.ne.s32.totalorder %s141, %s142
      %p156 = scmp.eq.s32.totalorder %s24, 1
      %p157 = por %p155, %p156
      %p159 = scmp.ne.s32.totalorder %s142, %s158
      %p160 = scmp.eq.s32.totalorder %s24, 0
      %p161 = por %p159, %p160
      %p162 = scmp.le.s32.totalorder 1, %s18
      %p163 = scmp.lt.s32.totalorder %s18, 3
      %p164 = pnand %p162, %p163
      %p165 = pneg %p164
      // Predicated region
      $region9: #{tpu_custom_call.1} parent=5 // pred_check
        _
      $region10: #{tpu_custom_call.1} parent=5 // pred_check_branch
        %167 = sbr.rel (%p164) target = $region12
      $region11: #{tpu_custom_call.1} parent=5 // pred_region
        %s168 = ssub.s32 %s18, 1
        // Predicated region
        $region13: #{tpu_custom_call.1} parent=11 // pred_check
          %p169 = pneg %p65
        $region14: #{tpu_custom_call.1} parent=11 // pred_check_branch
          %171 = sbr.rel (%p169) target = $region16
        $region15: #{tpu_custom_call.1} parent=11 // pred_region
          %s173 = ssub.s32 3072, 3072
          %174 = vsyncadd [#allocation6], %s173
          %s175 = sshll.u32 [#allocation5], 4
          %s176 = int_to_ptr.vmem [resolvable:$true] %s175
          %181 = dma.hbm_to_vmem [thread:$0]  %s1, 3072, %s176, [#allocation6], 64, 64, 4
        $region16: #{tpu_custom_call.1} parent=11 // pred_fallthru
          _
        // Predicated region
        $region17: #{tpu_custom_call.1} parent=11 // pred_check
          %p182 = pneg %p86
        $region18: #{tpu_custom_call.1} parent=11 // pred_check_branch
          %184 = sbr.rel (%p182) target = $region20
        $region19: #{tpu_custom_call.1} parent=11 // pred_region
          _
        $region20: #{tpu_custom_call.1} parent=11 // pred_fallthru
          _
        // Predicated region
        $region21: #{tpu_custom_call.1} parent=11 // pred_check
          %p185 = pneg %p107
        $region22: #{tpu_custom_call.1} parent=11 // pred_check_branch
          %187 = sbr.rel (%p185) target = $region24
        $region23: #{tpu_custom_call.1} parent=11 // pred_region
          %s189 = ssub.s32 3072, 3072
          %190 = vsyncadd [#allocation6], %s189
          %s191 = sshll.u32 [#allocation7], 4
          %s192 = int_to_ptr.vmem [resolvable:$true] %s191
          %197 = dma.hbm_to_vmem [thread:$0]  %s3, 3072, %s192, [#allocation6], 64, 64, 4
        $region24: #{tpu_custom_call.1} parent=11 // pred_fallthru
          _
        // Predicated region
        $region25: #{tpu_custom_call.1} parent=11 // pred_check
          %p198 = pneg %p128
        $region26: #{tpu_custom_call.1} parent=11 // pred_check_branch
          %200 = sbr.rel (%p198) target = $region28
        $region27: #{tpu_custom_call.1} parent=11 // pred_region
          _
        $region28: #{tpu_custom_call.1} parent=11 // pred_fallthru
          _
      $region12: #{tpu_custom_call.1} parent=5 // pred_fallthru
        _
      %p201 = scmp.lt.s32.totalorder %s18, 2
      // Predicated region
      $region29: #{tpu_custom_call.1} parent=5 // pred_check
        %p202 = pneg %p201
      $region30: #{tpu_custom_call.1} parent=5 // pred_check_branch
        %204 = sbr.rel (%p202) target = $region32
      $region31: #{tpu_custom_call.1} parent=5 // pred_region
        // Predicated region
        $region33: #{tpu_custom_call.1} parent=31 // pred_check
          %p205 = pneg %p38
        $region34: #{tpu_custom_call.1} parent=31 // pred_check_branch
          %207 = sbr.rel (%p205) target = $region36
        $region35: #{tpu_custom_call.1} parent=31 // pred_region
          %s208 = sand.u32 %s28, 1
          %s209 = scalar_lea.sflag [#allocation3], %s208
          %s210 = sand.u32 %s28, 1
          %s211 = smul.addr %s210, 16
          %s212 = scalar_lea.vmem [#allocation2], %s211
          %s214 = ssub.s32 256, 256
          %215 = vsyncadd %s209, %s214
          %s216 = smul.addr %s18, 2
          %s217 = smul.addr %s216, 128
          %s218 = scalar_lea.hbm %s0, %s217
          %s219 = sshll.u32 %s212, 4
          %s220 = int_to_ptr.vmem [resolvable:$true] %s219
          %225 = dma.hbm_to_vmem [thread:$0]  %s218, 256, %s220, %s209, 128, 128, 8
        $region36: #{tpu_custom_call.1} parent=31 // pred_fallthru
          _
      $region32: #{tpu_custom_call.1} parent=5 // pred_fallthru
        _
      %p226 = scmp.le.s32.totalorder 1, %s18
      %p227 = scmp.lt.s32.totalorder %s18, 3
      %p228 = pnand %p226, %p227
      %p229 = pneg %p228
      // Predicated region
      $region37: #{tpu_custom_call.1} parent=5 // pred_check
        _
      $region38: #{tpu_custom_call.1} parent=5 // pred_check_branch
        %231 = sbr.rel (%p228) target = $region40
      $region39: #{tpu_custom_call.1} parent=5 // pred_region
        %s232 = ssub.s32 %s18, 1
        %s233 = sand.u32 %s31, 1
        %s234 = scalar_lea.sflag [#allocation3], %s233
        %s235 = sand.u32 %s31, 1
        %s236 = smul.addr %s235, 16
        %s237 = scalar_lea.vmem [#allocation2], %s236
        // Predicated region
        $region41: #{tpu_custom_call.1} parent=39 // pred_check
          %p238 = pneg %p44
        $region42: #{tpu_custom_call.1} parent=39 // pred_check_branch
          %240 = sbr.rel (%p238) target = $region44
        $region43: #{tpu_custom_call.1} parent=39 // pred_region
          %241 = dma.done %s234, 256
        $region44: #{tpu_custom_call.1} parent=39 // pred_fallthru
          _
        // Predicated region
        $region45: #{tpu_custom_call.1} parent=39 // pred_check
          %p242 = pneg %p65
        $region46: #{tpu_custom_call.1} parent=39 // pred_check_branch
          %244 = sbr.rel (%p242) target = $region48
        $region47: #{tpu_custom_call.1} parent=39 // pred_region
          %245 = dma.done [#allocation6], 3072
        $region48: #{tpu_custom_call.1} parent=39 // pred_fallthru
          _
        // Predicated region
        $region49: #{tpu_custom_call.1} parent=39 // pred_check
          %p246 = pneg %p107
        $region50: #{tpu_custom_call.1} parent=39 // pred_check_branch
          %248 = sbr.rel (%p246) target = $region52
        $region51: #{tpu_custom_call.1} parent=39 // pred_region
          %249 = dma.done [#allocation6], 3072
        $region52: #{tpu_custom_call.1} parent=39 // pred_fallthru
          _
        %s250 = sand.u32 %s31, 1
        %s251 = scalar_lea.sflag [#allocation3], %s250
        %s252 = sand.u32 %s31, 1
        %s253 = smul.addr %s252, 16
        %s254 = scalar_lea.vmem [#allocation2], %s253
        %p255 = pneg %p44
        %p256 = pneg %p41
        %p257 = pneg %p65
        %p258 = pneg %p62
        %p259 = pneg %p86
        %p260 = pneg %p83
        %p261 = pneg %p107
        %p262 = pneg %p104
        %p263 = pneg %p128
        %p264 = pneg %p125
        %p265 = pneg %p154
        %p266 = pneg %p151
        %s267 = sand.u32 %s141, 1
        %s268 = scalar_lea.sflag [#allocation4], %s267
        %s269 = sand.u32 %s141, 1
        %s270 = smul.addr %s269, 16
        %s271 = scalar_lea.vmem [#allocation8], %s270
        %v273 = vld [vmem:[%s237] sm:$0xff]
        %v274 = vld [vmem:[%s237 + $0x8] sm:$0xff]
        %v275 = vpack.c.bf16 %v274, %v273
        %v277 = vshrl.u32 %v275, 16
        %v279 = vrot.slane %v277, 7
        %v280 = vshll.u32 %v275, 16
        %v282 = vor.u32 %v279, %v280
        %vm284 = vcmask 1040384
        %vm285 = vsmask.f32 256
        %vm286 = vmand %vm284, %vm285
        %v287 = vsel %vm286, 0, %v282
        %v288 = vrot.slane %v280, 1
        %v289 = vor.u32 %v277, %v288
        %vm291 = vcmask 1047552
        %vm292 = vsmask.f32 7424
        %vm293 = vmand %vm291, %vm292
        %v294 = vsel %vm293, %v289, 0
        %v295 = vld [vmem:[#allocation5] sm:$0xf]
        %v296 = vld [vmem:[#allocation5 + $0x4] sm:$0xf]
        %v297 = vld [vmem:[#allocation5 + $0x8] sm:$0xf]
        %v298 = vld [vmem:[#allocation5 + $0xc] sm:$0xf]
        %v299 = vld [vmem:[#allocation5 + $0x10] sm:$0xf]
        %v300 = vld [vmem:[#allocation5 + $0x14] sm:$0xf]
        %v301 = vld [vmem:[#allocation5 + $0x18] sm:$0xf]
        %v302 = vld [vmem:[#allocation5 + $0x1c] sm:$0xf]
        %v303 = vld [vmem:[#allocation5 + $0x20] sm:$0xf]
        %v304 = vld [vmem:[#allocation5 + $0x24] sm:$0xf]
        %v305 = vld [vmem:[#allocation5 + $0x28] sm:$0xf]
        %v306 = vld [vmem:[#allocation5 + $0x2c] sm:$0xf]
        %v307 = vld [vmem:[#allocation5 + $0x30] sm:$0xf]
        %v308 = vld [vmem:[#allocation5 + $0x34] sm:$0xf]
        %v309 = vld [vmem:[#allocation5 + $0x38] sm:$0xf]
        %v310 = vld [vmem:[#allocation5 + $0x3c] sm:$0xf]
        %v311 = vld [vmem:[#allocation5 + $0x40] sm:$0xf]
        %v312 = vld [vmem:[#allocation5 + $0x44] sm:$0xf]
        %v313 = vld [vmem:[#allocation5 + $0x48] sm:$0xf]
        %v314 = vld [vmem:[#allocation5 + $0x4c] sm:$0xf]
        %v315 = vld [vmem:[#allocation5 + $0x50] sm:$0xf]
        %v316 = vld [vmem:[#allocation5 + $0x54] sm:$0xf]
        %v317 = vld [vmem:[#allocation5 + $0x58] sm:$0xf]
        %v318 = vld [vmem:[#allocation5 + $0x5c] sm:$0xf]
        %v319 = vld [vmem:[#allocation5 + $0x60] sm:$0xf]
        %v320 = vld [vmem:[#allocation5 + $0x64] sm:$0xf]
        %v321 = vld [vmem:[#allocation5 + $0x68] sm:$0xf]
        %v322 = vld [vmem:[#allocation5 + $0x6c] sm:$0xf]
        %v323 = vld [vmem:[#allocation5 + $0x70] sm:$0xf]
        %v324 = vld [vmem:[#allocation5 + $0x74] sm:$0xf]
        %v325 = vld [vmem:[#allocation5 + $0x78] sm:$0xf]
        %v326 = vld [vmem:[#allocation5 + $0x7c] sm:$0xf]
        %v327 = vld [vmem:[#allocation5 + $0x80] sm:$0xf]
        %v328 = vld [vmem:[#allocation5 + $0x84] sm:$0xf]
        %v329 = vld [vmem:[#allocation5 + $0x88] sm:$0xf]
        %v330 = vld [vmem:[#allocation5 + $0x8c] sm:$0xf]
        %v331 = vld [vmem:[#allocation5 + $0x90] sm:$0xf]
        %v332 = vld [vmem:[#allocation5 + $0x94] sm:$0xf]
        %v333 = vld [vmem:[#allocation5 + $0x98] sm:$0xf]
        %v334 = vld [vmem:[#allocation5 + $0x9c] sm:$0xf]
        %v335 = vld [vmem:[#allocation5 + $0xa0] sm:$0xf]
        %v336 = vld [vmem:[#allocation5 + $0xa4] sm:$0xf]
        %v337 = vld [vmem:[#allocation5 + $0xa8] sm:$0xf]
        %v338 = vld [vmem:[#allocation5 + $0xac] sm:$0xf]
        %v339 = vld [vmem:[#allocation5 + $0xb0] sm:$0xf]
        %v340 = vld [vmem:[#allocation5 + $0xb4] sm:$0xf]
        %v341 = vld [vmem:[#allocation5 + $0xb8] sm:$0xf]
        %v342 = vld [vmem:[#allocation5 + $0xbc] sm:$0xf]
        %v343 = vld [vmem:[%s2] sm:$0x1]
        %v345 = vlaneseq
        %v346 = vshrl.u32 %v345, 7
        %v347 = vsub.s32 0, %v346
        %v348 = vrot.slane %v343, %v347
        %v398 = vunpack.c.l.b16 %v295
        %v399 = vunpack.c.l.b16 %v296
        %v400 = vunpack.c.l.b16 %v297
        %v401 = vunpack.c.l.b16 %v298
        %v402 = vunpack.c.l.b16 %v299
        %v403 = vunpack.c.l.b16 %v300
        %v404 = vunpack.c.l.b16 %v301
        %v405 = vunpack.c.l.b16 %v302
        %v406 = vunpack.c.l.b16 %v303
        %v407 = vunpack.c.l.b16 %v304
        %v408 = vunpack.c.l.b16 %v305
        %v409 = vunpack.c.l.b16 %v306
        %v410 = vunpack.c.l.b16 %v307
        %v411 = vunpack.c.l.b16 %v308
        %v412 = vunpack.c.l.b16 %v309
        %v413 = vunpack.c.l.b16 %v310
        %v414 = vunpack.c.l.b16 %v311
        %v415 = vunpack.c.l.b16 %v312
        %v416 = vunpack.c.l.b16 %v313
        %v417 = vunpack.c.l.b16 %v314
        %v418 = vunpack.c.l.b16 %v315
        %v419 = vunpack.c.l.b16 %v316
        %v420 = vunpack.c.l.b16 %v317
        %v421 = vunpack.c.l.b16 %v318
        %v422 = vunpack.c.l.b16 %v319
        %v423 = vunpack.c.l.b16 %v320
        %v424 = vunpack.c.l.b16 %v321
        %v425 = vunpack.c.l.b16 %v322
        %v426 = vunpack.c.l.b16 %v323
        %v427 = vunpack.c.l.b16 %v324
        %v428 = vunpack.c.l.b16 %v325
        %v429 = vunpack.c.l.b16 %v326
        %v430 = vunpack.c.l.b16 %v327
        %v431 = vunpack.c.l.b16 %v328
        %v432 = vunpack.c.l.b16 %v329
        %v433 = vunpack.c.l.b16 %v330
        %v434 = vunpack.c.l.b16 %v331
        %v435 = vunpack.c.l.b16 %v332
        %v436 = vunpack.c.l.b16 %v333
        %v437 = vunpack.c.l.b16 %v334
        %v438 = vunpack.c.l.b16 %v335
        %v439 = vunpack.c.l.b16 %v336
        %v440 = vunpack.c.l.b16 %v337
        %v441 = vunpack.c.l.b16 %v338
        %v442 = vunpack.c.l.b16 %v339
        %v443 = vunpack.c.l.b16 %v340
        %v444 = vunpack.c.l.b16 %v341
        %v445 = vunpack.c.l.b16 %v342
        %v446 = vpack.c.b16 %v399, %v398
        %v447 = vpack.c.b16 %v401, %v400
        %v448 = vpack.c.b16 %v403, %v402
        %v449 = vpack.c.b16 %v405, %v404
        %v450 = vpack.c.b16 %v407, %v406
        %v451 = vpack.c.b16 %v409, %v408
        %v452 = vpack.c.b16 %v411, %v410
        %v453 = vpack.c.b16 %v413, %v412
        %v454 = vpack.c.b16 %v415, %v414
        %v455 = vpack.c.b16 %v417, %v416
        %v456 = vpack.c.b16 %v419, %v418
        %v457 = vpack.c.b16 %v421, %v420
        %v458 = vpack.c.b16 %v423, %v422
        %v459 = vpack.c.b16 %v425, %v424
        %v460 = vpack.c.b16 %v427, %v426
        %v461 = vpack.c.b16 %v429, %v428
        %v462 = vpack.c.b16 %v431, %v430
        %v463 = vpack.c.b16 %v433, %v432
        %v464 = vpack.c.b16 %v435, %v434
        %v465 = vpack.c.b16 %v437, %v436
        %v466 = vpack.c.b16 %v439, %v438
        %v467 = vpack.c.b16 %v441, %v440
        %v468 = vpack.c.b16 %v443, %v442
        %v469 = vpack.c.b16 %v445, %v444
        %494 = vmatprep.subr.bf16.mxu0 0
        %495 = vmatpush1.bf16.msra.mxu0 %v446
        %496 = vmatprep.subr.bf16.mxu0 0
        %497 = vmatpush1.bf16.msra.mxu0 %v447
        %498 = vmatprep.subr.bf16.mxu0 0
        %499 = vmatpush1.bf16.msra.mxu0 %v448
        %500 = vmatprep.subr.bf16.mxu0 0
        %501 = vmatpush1.bf16.msra.mxu0 %v449
        %502 = vmatprep.subr.bf16.mxu0 0
        %503 = vmatpush1.bf16.msra.mxu0 %v450
        %504 = vmatprep.subr.bf16.mxu0 0
        %505 = vmatpush1.bf16.msra.mxu0 %v451
        %506 = vmatprep.subr.bf16.mxu0 0
        %507 = vmatpush1.bf16.msra.mxu0 %v452
        %508 = vmatprep.subr.bf16.mxu0 0
        %509 = vmatpush1.bf16.msra.mxu0 %v453
        %510 = vmatprep.subr.bf16.mxu0 0
        %511 = vmatpush1.bf16.msra.mxu0 %v454
        %512 = vmatprep.subr.bf16.mxu0 0
        %513 = vmatpush1.bf16.msra.mxu0 %v455
        %514 = vmatprep.subr.bf16.mxu0 0
        %515 = vmatpush1.bf16.msra.mxu0 %v456
        %516 = vmatprep.subr.bf16.mxu0 0
        %517 = vmatpush1.bf16.msra.mxu0 %v457
        %518 = vmatprep.subr.bf16.mxu0 0
        %519 = vmatpush1.bf16.msra.mxu0 %v458
        %520 = vmatprep.subr.bf16.mxu0 0
        %521 = vmatpush1.bf16.msra.mxu0 %v459
        %522 = vmatprep.subr.bf16.mxu0 0
        %523 = vmatpush1.bf16.msra.mxu0 %v460
        %524 = vmatprep.subr.bf16.mxu0 0
        %525 = vmatpush1.bf16.msra.mxu0 %v461
        %526 = vmatprep.mubr.bf16.mxu0 %v275
        %527 = vmatmul.mubr.bf16.gmra.mrb[0].mxu0 %v287
        %v528 = vpop.f32.mrb[0].mxu0
        %v529 = vadd.f32 %v348, %v528
        %v530 = vpop.f32.mrb[0].mxu0
        %v531 = vpop.f32.mrb[0].mxu0
        %v532 = vadd.f32 %v348, %v531
        %v533 = vpop.f32.mrb[0].mxu0
        %534 = vdwg.mxu0
        %535 = vmatprep.subr.bf16.mxu0 0
        %536 = vmatpush1.bf16.msra.mxu0 %v462
        %537 = vmatprep.subr.bf16.mxu0 0
        %538 = vmatpush1.bf16.msra.mxu0 %v463
        %539 = vmatprep.subr.bf16.mxu0 0
        %540 = vmatpush1.bf16.msra.mxu0 %v464
        %541 = vmatprep.subr.bf16.mxu0 0
        %542 = vmatpush1.bf16.msra.mxu0 %v465
        %543 = vmatprep.subr.bf16.mxu0 0
        %544 = vmatpush1.bf16.msra.mxu0 %v466
        %545 = vmatprep.subr.bf16.mxu0 0
        %546 = vmatpush1.bf16.msra.mxu0 %v467
        %547 = vmatprep.subr.bf16.mxu0 0
        %548 = vmatpush1.bf16.msra.mxu0 %v468
        %549 = vmatprep.subr.bf16.mxu0 0
        %550 = vmatpush1.bf16.msra.mxu0 %v469
        %551 = vmatprep.subr.bf16.mxu0 0
        %552 = vmatpush1.bf16.msra.mxu0 0
        %553 = vmatprep.subr.bf16.mxu0 0
        %554 = vmatpush1.bf16.msra.mxu0 0
        %555 = vmatprep.subr.bf16.mxu0 0
        %556 = vmatpush1.bf16.msra.mxu0 0
        %557 = vmatprep.subr.bf16.mxu0 0
        %558 = vmatpush1.bf16.msra.mxu0 0
        %559 = vmatprep.subr.bf16.mxu0 0
        %560 = vmatpush1.bf16.msra.mxu0 0
        %561 = vmatprep.subr.bf16.mxu0 0
        %562 = vmatpush1.bf16.msra.mxu0 0
        %563 = vmatprep.subr.bf16.mxu0 0
        %564 = vmatpush1.bf16.msra.mxu0 0
        %565 = vmatprep.subr.bf16.mxu0 0
        %566 = vmatpush1.bf16.msra.mxu0 0
        %567 = vmatprep.mubr.bf16.mxu0 0
        %568 = vmatmul.mubr.bf16.gmra.mrb[0].mxu0 %v294
        %v569 = vpop.f32.mrb[0].mxu0
        %v570 = vadd.f32 %v529, %v569
        %v571 = vpop.f32.mrb[0].mxu0
        %v572 = vpop.f32.mrb[0].mxu0
        %v573 = vadd.f32 %v532, %v572
        %v574 = vpop.f32.mrb[0].mxu0
        %575 = vdwg.mxu0
        %v576 = vmax.f32 %v570, 0.0
        %v577 = vmax.f32 %v573, 0.0
        %v578 = vpack.c.bf16 %v577, %v576
        %v580 = vshrl.u32 %v578, 16
        %v582 = vrot.slane %v580, 7
        %v583 = vshll.u32 %v578, 16
        %v585 = vor.u32 %v582, %v583
        %v587 = vsel %vm286, 0, %v585
        %v588 = vrot.slane %v583, 1
        %v589 = vor.u32 %v580, %v588
        %v591 = vsel %vm293, %v589, 0
        %v592 = vld [vmem:[#allocation7] sm:$0xf]
        %v593 = vld [vmem:[#allocation7 + $0x4] sm:$0xf]
        %v594 = vld [vmem:[#allocation7 + $0x8] sm:$0xf]
        %v595 = vld [vmem:[#allocation7 + $0xc] sm:$0xf]
        %v596 = vld [vmem:[#allocation7 + $0x10] sm:$0xf]
        %v597 = vld [vmem:[#allocation7 + $0x14] sm:$0xf]
        %v598 = vld [vmem:[#allocation7 + $0x18] sm:$0xf]
        %v599 = vld [vmem:[#allocation7 + $0x1c] sm:$0xf]
        %v600 = vld [vmem:[#allocation7 + $0x20] sm:$0xf]
        %v601 = vld [vmem:[#allocation7 + $0x24] sm:$0xf]
        %v602 = vld [vmem:[#allocation7 + $0x28] sm:$0xf]
        %v603 = vld [vmem:[#allocation7 + $0x2c] sm:$0xf]
        %v604 = vld [vmem:[#allocation7 + $0x30] sm:$0xf]
        %v605 = vld [vmem:[#allocation7 + $0x34] sm:$0xf]
        %v606 = vld [vmem:[#allocation7 + $0x38] sm:$0xf]
        %v607 = vld [vmem:[#allocation7 + $0x3c] sm:$0xf]
        %v608 = vld [vmem:[#allocation7 + $0x40] sm:$0xf]
        %v609 = vld [vmem:[#allocation7 + $0x44] sm:$0xf]
        %v610 = vld [vmem:[#allocation7 + $0x48] sm:$0xf]
        %v611 = vld [vmem:[#allocation7 + $0x4c] sm:$0xf]
        %v612 = vld [vmem:[#allocation7 + $0x50] sm:$0xf]
        %v613 = vld [vmem:[#allocation7 + $0x54] sm:$0xf]
        %v614 = vld [vmem:[#allocation7 + $0x58] sm:$0xf]
        %v615 = vld [vmem:[#allocation7 + $0x5c] sm:$0xf]
        %v616 = vld [vmem:[#allocation7 + $0x60] sm:$0xf]
        %v617 = vld [vmem:[#allocation7 + $0x64] sm:$0xf]
        %v618 = vld [vmem:[#allocation7 + $0x68] sm:$0xf]
        %v619 = vld [vmem:[#allocation7 + $0x6c] sm:$0xf]
        %v620 = vld [vmem:[#allocation7 + $0x70] sm:$0xf]
        %v621 = vld [vmem:[#allocation7 + $0x74] sm:$0xf]
        %v622 = vld [vmem:[#allocation7 + $0x78] sm:$0xf]
        %v623 = vld [vmem:[#allocation7 + $0x7c] sm:$0xf]
        %v624 = vld [vmem:[#allocation7 + $0x80] sm:$0xf]
        %v625 = vld [vmem:[#allocation7 + $0x84] sm:$0xf]
        %v626 = vld [vmem:[#allocation7 + $0x88] sm:$0xf]
        %v627 = vld [vmem:[#allocation7 + $0x8c] sm:$0xf]
        %v628 = vld [vmem:[#allocation7 + $0x90] sm:$0xf]
        %v629 = vld [vmem:[#allocation7 + $0x94] sm:$0xf]
        %v630 = vld [vmem:[#allocation7 + $0x98] sm:$0xf]
        %v631 = vld [vmem:[#allocation7 + $0x9c] sm:$0xf]
        %v632 = vld [vmem:[#allocation7 + $0xa0] sm:$0xf]
        %v633 = vld [vmem:[#allocation7 + $0xa4] sm:$0xf]
        %v634 = vld [vmem:[#allocation7 + $0xa8] sm:$0xf]
        %v635 = vld [vmem:[#allocation7 + $0xac] sm:$0xf]
        %v636 = vld [vmem:[#allocation7 + $0xb0] sm:$0xf]
        %v637 = vld [vmem:[#allocation7 + $0xb4] sm:$0xf]
        %v638 = vld [vmem:[#allocation7 + $0xb8] sm:$0xf]
        %v639 = vld [vmem:[#allocation7 + $0xbc] sm:$0xf]
        %v640 = vld [vmem:[%s4] sm:$0x1]
        %v642 = vlaneseq
        %v643 = vshrl.u32 %v642, 7
        %v644 = vsub.s32 0, %v643
        %v645 = vrot.slane %v640, %v644
        %v695 = vunpack.c.l.b16 %v592
        %v696 = vunpack.c.l.b16 %v593
        %v697 = vunpack.c.l.b16 %v594
        %v698 = vunpack.c.l.b16 %v595
        %v699 = vunpack.c.l.b16 %v596
        %v700 = vunpack.c.l.b16 %v597
        %v701 = vunpack.c.l.b16 %v598
        %v702 = vunpack.c.l.b16 %v599
        %v703 = vunpack.c.l.b16 %v600
        %v704 = vunpack.c.l.b16 %v601
        %v705 = vunpack.c.l.b16 %v602
        %v706 = vunpack.c.l.b16 %v603
        %v707 = vunpack.c.l.b16 %v604
        %v708 = vunpack.c.l.b16 %v605
        %v709 = vunpack.c.l.b16 %v606
        %v710 = vunpack.c.l.b16 %v607
        %v711 = vunpack.c.l.b16 %v608
        %v712 = vunpack.c.l.b16 %v609
        %v713 = vunpack.c.l.b16 %v610
        %v714 = vunpack.c.l.b16 %v611
        %v715 = vunpack.c.l.b16 %v612
        %v716 = vunpack.c.l.b16 %v613
        %v717 = vunpack.c.l.b16 %v614
        %v718 = vunpack.c.l.b16 %v615
        %v719 = vunpack.c.l.b16 %v616
        %v720 = vunpack.c.l.b16 %v617
        %v721 = vunpack.c.l.b16 %v618
        %v722 = vunpack.c.l.b16 %v619
        %v723 = vunpack.c.l.b16 %v620
        %v724 = vunpack.c.l.b16 %v621
        %v725 = vunpack.c.l.b16 %v622
        %v726 = vunpack.c.l.b16 %v623
        %v727 = vunpack.c.l.b16 %v624
        %v728 = vunpack.c.l.b16 %v625
        %v729 = vunpack.c.l.b16 %v626
        %v730 = vunpack.c.l.b16 %v627
        %v731 = vunpack.c.l.b16 %v628
        %v732 = vunpack.c.l.b16 %v629
        %v733 = vunpack.c.l.b16 %v630
        %v734 = vunpack.c.l.b16 %v631
        %v735 = vunpack.c.l.b16 %v632
        %v736 = vunpack.c.l.b16 %v633
        %v737 = vunpack.c.l.b16 %v634
        %v738 = vunpack.c.l.b16 %v635
        %v739 = vunpack.c.l.b16 %v636
        %v740 = vunpack.c.l.b16 %v637
        %v741 = vunpack.c.l.b16 %v638
        %v742 = vunpack.c.l.b16 %v639
        %v743 = vpack.c.b16 %v696, %v695
        %v744 = vpack.c.b16 %v698, %v697
        %v745 = vpack.c.b16 %v700, %v699
        %v746 = vpack.c.b16 %v702, %v701
        %v747 = vpack.c.b16 %v704, %v703
        %v748 = vpack.c.b16 %v706, %v705
        %v749 = vpack.c.b16 %v708, %v707
        %v750 = vpack.c.b16 %v710, %v709
        %v751 = vpack.c.b16 %v712, %v711
        %v752 = vpack.c.b16 %v714, %v713
        %v753 = vpack.c.b16 %v716, %v715
        %v754 = vpack.c.b16 %v718, %v717
        %v755 = vpack.c.b16 %v720, %v719
        %v756 = vpack.c.b16 %v722, %v721
        %v757 = vpack.c.b16 %v724, %v723
        %v758 = vpack.c.b16 %v726, %v725
        %v759 = vpack.c.b16 %v728, %v727
        %v760 = vpack.c.b16 %v730, %v729
        %v761 = vpack.c.b16 %v732, %v731
        %v762 = vpack.c.b16 %v734, %v733
        %v763 = vpack.c.b16 %v736, %v735
        %v764 = vpack.c.b16 %v738, %v737
        %v765 = vpack.c.b16 %v740, %v739
        %v766 = vpack.c.b16 %v742, %v741
        %791 = vmatprep.subr.bf16.mxu0 0
        %792 = vmatpush1.bf16.msra.mxu0 %v743
        %793 = vmatprep.subr.bf16.mxu0 0
        %794 = vmatpush1.bf16.msra.mxu0 %v744
        %795 = vmatprep.subr.bf16.mxu0 0
        %796 = vmatpush1.bf16.msra.mxu0 %v745
        %797 = vmatprep.subr.bf16.mxu0 0
        %798 = vmatpush1.bf16.msra.mxu0 %v746
        %799 = vmatprep.subr.bf16.mxu0 0
        %800 = vmatpush1.bf16.msra.mxu0 %v747
        %801 = vmatprep.subr.bf16.mxu0 0
        %802 = vmatpush1.bf16.msra.mxu0 %v748
        %803 = vmatprep.subr.bf16.mxu0 0
        %804 = vmatpush1.bf16.msra.mxu0 %v749
        %805 = vmatprep.subr.bf16.mxu0 0
        %806 = vmatpush1.bf16.msra.mxu0 %v750
        %807 = vmatprep.subr.bf16.mxu0 0
        %808 = vmatpush1.bf16.msra.mxu0 %v751
        %809 = vmatprep.subr.bf16.mxu0 0
        %810 = vmatpush1.bf16.msra.mxu0 %v752
        %811 = vmatprep.subr.bf16.mxu0 0
        %812 = vmatpush1.bf16.msra.mxu0 %v753
        %813 = vmatprep.subr.bf16.mxu0 0
        %814 = vmatpush1.bf16.msra.mxu0 %v754
        %815 = vmatprep.subr.bf16.mxu0 0
        %816 = vmatpush1.bf16.msra.mxu0 %v755
        %817 = vmatprep.subr.bf16.mxu0 0
        %818 = vmatpush1.bf16.msra.mxu0 %v756
        %819 = vmatprep.subr.bf16.mxu0 0
        %820 = vmatpush1.bf16.msra.mxu0 %v757
        %821 = vmatprep.subr.bf16.mxu0 0
        %822 = vmatpush1.bf16.msra.mxu0 %v758
        %823 = vmatprep.mubr.bf16.mxu0 %v578
        %824 = vmatmul.mubr.bf16.gmra.mrb[0].mxu0 %v587
        %v825 = vpop.f32.mrb[0].mxu0
        %v826 = vadd.f32 %v645, %v825
        %v827 = vpop.f32.mrb[0].mxu0
        %v828 = vpop.f32.mrb[0].mxu0
        %v829 = vadd.f32 %v645, %v828
        %v830 = vpop.f32.mrb[0].mxu0
        %831 = vdwg.mxu0
        %832 = vmatprep.subr.bf16.mxu0 0
        %833 = vmatpush1.bf16.msra.mxu0 %v759
        %834 = vmatprep.subr.bf16.mxu0 0
        %835 = vmatpush1.bf16.msra.mxu0 %v760
        %836 = vmatprep.subr.bf16.mxu0 0
        %837 = vmatpush1.bf16.msra.mxu0 %v761
        %838 = vmatprep.subr.bf16.mxu0 0
        %839 = vmatpush1.bf16.msra.mxu0 %v762
        %840 = vmatprep.subr.bf16.mxu0 0
        %841 = vmatpush1.bf16.msra.mxu0 %v763
        %842 = vmatprep.subr.bf16.mxu0 0
        %843 = vmatpush1.bf16.msra.mxu0 %v764
        %844 = vmatprep.subr.bf16.mxu0 0
        %845 = vmatpush1.bf16.msra.mxu0 %v765
        %846 = vmatprep.subr.bf16.mxu0 0
        %847 = vmatpush1.bf16.msra.mxu0 %v766
        %848 = vmatprep.subr.bf16.mxu0 0
        %849 = vmatpush1.bf16.msra.mxu0 0
        %850 = vmatprep.subr.bf16.mxu0 0
        %851 = vmatpush1.bf16.msra.mxu0 0
        %852 = vmatprep.subr.bf16.mxu0 0
        %853 = vmatpush1.bf16.msra.mxu0 0
        %854 = vmatprep.subr.bf16.mxu0 0
        %855 = vmatpush1.bf16.msra.mxu0 0
        %856 = vmatprep.subr.bf16.mxu0 0
        %857 = vmatpush1.bf16.msra.mxu0 0
        %858 = vmatprep.subr.bf16.mxu0 0
        %859 = vmatpush1.bf16.msra.mxu0 0
        %860 = vmatprep.subr.bf16.mxu0 0
        %861 = vmatpush1.bf16.msra.mxu0 0
        %862 = vmatprep.subr.bf16.mxu0 0
        %863 = vmatpush1.bf16.msra.mxu0 0
        %864 = vmatprep.mubr.bf16.mxu0 0
        %865 = vmatmul.mubr.bf16.gmra.mrb[0].mxu0 %v591
        %v866 = vpop.f32.mrb[0].mxu0
        %v867 = vadd.f32 %v826, %v866
        %v868 = vpop.f32.mrb[0].mxu0
        %v869 = vpop.f32.mrb[0].mxu0
        %v870 = vadd.f32 %v829, %v869
        %v871 = vpop.f32.mrb[0].mxu0
        %872 = vdwg.mxu0
        %v873 = vadd.f32 %v867, %v273
        %v874 = vadd.f32 %v870, %v274
        %v875 = vmax.f32 %v873, 0.0
        %v876 = vmax.f32 %v874, 0.0
        %877 = vst [vmem:[%s271] sm:$0xff] %v875
        %878 = vst [vmem:[%s271 + $0x8] sm:$0xff] %v876
        %s879 = sand.u32 %s141, 1
        %s880 = scalar_lea.sflag [#allocation4], %s879
        %s881 = sand.u32 %s141, 1
        %s882 = smul.addr %s881, 16
        %s883 = scalar_lea.vmem [#allocation8], %s882
        // Predicated region
        $region53: #{tpu_custom_call.1} parent=39 // pred_check
          %p884 = pneg %p151
        $region54: #{tpu_custom_call.1} parent=39 // pred_check_branch
          %886 = sbr.rel (%p884) target = $region56
        $region55: #{tpu_custom_call.1} parent=39 // pred_region
          %s888 = ssub.s32 256, 256
          %889 = vsyncadd %s880, %s888
          %s890 = smul.addr %s23, 2
          %s891 = smul.addr %s890, 128
          %s892 = scalar_lea.hbm %s5, %s891
          %s893 = sshll.u32 %s883, 4
          %s894 = int_to_ptr.vmem [resolvable:$true] %s893
          %899 = dma.vmem_to_hbm [thread:$0]  %s894, 256, %s892, %s880, 128, 128, 8
        $region56: #{tpu_custom_call.1} parent=39 // pred_fallthru
          _
      $region40: #{tpu_custom_call.1} parent=5 // pred_fallthru
        _
      %p900 = scmp.le.s32.totalorder 2, %s18
      // Predicated region
      $region57: #{tpu_custom_call.1} parent=5 // pred_check
        %p901 = pneg %p900
      $region58: #{tpu_custom_call.1} parent=5 // pred_check_branch
        %903 = sbr.rel (%p901) target = $region60
      $region59: #{tpu_custom_call.1} parent=5 // pred_region
        %s904 = ssub.s32 %s18, 2
        // Predicated region
        $region61: #{tpu_custom_call.1} parent=59 // pred_check
          %p905 = pneg %p157
        $region62: #{tpu_custom_call.1} parent=59 // pred_check_branch
          %907 = sbr.rel (%p905) target = $region64
        $region63: #{tpu_custom_call.1} parent=59 // pred_region
          %s908 = sand.u32 %s142, 1
          %s909 = scalar_lea.sflag [#allocation4], %s908
          %s910 = sand.u32 %s142, 1
          %s911 = smul.addr %s910, 16
          %s912 = scalar_lea.vmem [#allocation8], %s911
          %913 = dma.done %s909, 256
        $region64: #{tpu_custom_call.1} parent=59 // pred_fallthru
          _
      $region60: #{tpu_custom_call.1} parent=5 // pred_fallthru
        _
    $region6: #{tpu_custom_call.1} parent=1 // loop_footer
      %s22 = sadd.s32 1, %s18
    $region7: #{tpu_custom_call.1} parent=1 // loop_footer_branch
      %17 = sbr.rel target = $region3
    $region8: #{tpu_custom_call.1} parent=1 // loop_exit
      _
    %914 = vsyncpa [#allocation3], 1
    %s915 = scalar_lea.sflag [#allocation3], 1
    %916 = vsyncpa %s915, 1
    %917 = vsyncpa [#allocation6], 1
    %918 = vsyncpa [#allocation4], 1
    %s919 = scalar_lea.sflag [#allocation4], 1
    %920 = vsyncpa %s919, 1

</llo_original>
